<compile_context>
chip_gen: v7x
topology: tpu7x:2x2x1
jax: 0.10.0
libtpu: 0.0.40
codegen_flags: <defaults>
</compile_context>

<pallas_src>
import jax
import jax.numpy as jnp
from jax.experimental import pallas as pl
from jax.experimental.pallas import tpu as pltpu

MAT_DIFF_LOSS_SCALE = 0.001
_ROW_FOLD = 8             # sublane fold: (N, C) -> (N/8, 8*C), lane-dense
_DEFAULT_TILE_ROWS = 1024  # folded rows per grid step (= 8192 original rows)
_STRIP_ROWS = 256          # folded rows per in-kernel strip


def _round_up(x, m):
    return ((x + m - 1) // m) * m


def _make_kernel(strip, n_strips):
    def kernel(pred_ref, tgt_ref, w_ref, lane_ref, rep_ref, trans_ref, out_ref):
        i = pl.program_id(0)
        nt = pl.num_programs(0)
        rc = w_ref.shape[-1]

        # Resident constants, broadcast once (hoisted out of the strip loop --
        # JAX does not CSE broadcast_in_dim).
        w_b = jnp.broadcast_to(w_ref[...], (strip, rc))        # class weight per lane
        lane_b = jnp.broadcast_to(lane_ref[...], (strip, rc))  # class id per lane (= lane % C)
        rep = rep_ref[...]                                     # (8, 8*C) fold replication

        zero = jnp.zeros((1, rc), jnp.float32)

        def body(s, carry):
            num_v, den_v = carry
            off = pl.multiple_of(s * strip, strip)
            p = pred_ref[pl.ds(off, strip), :].astype(jnp.float32)   # (S, 8*C) log-probs
            t = tgt_ref[pl.ds(off, strip), :].astype(jnp.float32)    # (S, 8)   class ids
            # tgt_rep[s, l] = target of fold slot l // C, built on the (idle) MXU.
            # Exact even at bf16 matmul precision: ids / sentinel are small ints (< 2^8).
            t_rep = jnp.dot(t, rep, preferred_element_type=jnp.float32)
            # Single compare + select: class weight at the target lane, 0 elsewhere.
            # Padded / negative / out-of-range targets never match any lane class.
            wm = jnp.where(t_rep == lane_b, w_b, 0.0)                # (S, 8*C)
            num_v = num_v + jnp.sum(p * wm, axis=0, keepdims=True)
            den_v = den_v + jnp.sum(wm, axis=0, keepdims=True)
            return num_v, den_v

        num_v, den_v = jax.lax.fori_loop(0, n_strips, body, (zero, zero), unroll=True)

        nll_num = -jnp.sum(num_v)          # sum_i w[t_i] * (-logp_i[t_i])
        nll_den = jnp.sum(den_v)           # sum_i w[t_i]

        lane = jax.lax.broadcasted_iota(jnp.int32, (8, 128), 1)
        base = (jnp.where(lane == 0, nll_num, 0.0) +
                jnp.where(lane == 1, nll_den, 0.0))

        @pl.when(i < nt - 1)
        def _():
            out_ref[...] = base

        # Feature-transform regularizer: last grid step only; trans_feat has a
        # constant-index BlockSpec so it is DMA'd once and stays resident.
        @pl.when(i == nt - 1)
        def _():
            trans = trans_ref[...]                                   # (B, K, K)
            k_dim = trans.shape[-1]
            gram = jnp.einsum('bij,bkj->bik', trans, trans,
                              preferred_element_type=jnp.float32)
            row = jax.lax.broadcasted_iota(jnp.int32, (1, k_dim, k_dim), 1)
            col = jax.lax.broadcasted_iota(jnp.int32, (1, k_dim, k_dim), 2)
            # Direct (gram - I): avoids catastrophic cancellation of the expanded
            # sum(g^2) - 2*tr(g) + K form when A @ A^T ~= I.
            diff = gram - jnp.where(row == col, 1.0, 0.0)
            sq = jnp.sum(jnp.sum(diff * diff, axis=2), axis=1, keepdims=True)  # (B, 1)
            fro = jnp.sqrt(sq)
            out_ref[...] = base + jnp.where(lane == 2, jnp.sum(fro), 0.0)

    return kernel


def get_loss(pred, target, trans_feat, weight, *, tile_rows=_DEFAULT_TILE_ROWS):
    """pred: (N, C) log-probs (f32 or bf16), target: (N,) int, trans_feat: (B, K, K),
    weight: (C,). Returns scalar f32 total loss (matches the torch module)."""
    pred = jnp.asarray(pred)
    if pred.dtype != jnp.bfloat16:
        pred = pred.astype(jnp.float32)     # bf16 inputs stay bf16 (half the HBM bytes)
    trans_feat = jnp.asarray(trans_feat, jnp.float32)
    target = jnp.asarray(target, jnp.int32).reshape(-1)
    weight = jnp.asarray(weight, jnp.float32).reshape(-1)

    n, c = pred.shape
    b, k, _ = trans_feat.shape
    r = _ROW_FOLD
    rc = r * c

    # ---- lane-dense fold + tile/pad the row axis ----
    rows8 = -(-n // r)                                        # ceil(N / 8) folded rows
    strip = min(_STRIP_ROWS, _round_up(rows8, 8))             # in-kernel strip (>= 8)
    tr_rows = min(_round_up(tile_rows, strip), _round_up(rows8, strip))
    num_tiles = -(-rows8 // tr_rows)
    if num_tiles > 1 and num_tiles % 2 == 1:
        num_tiles += 1          # even grid -> both v7x TensorCores stay busy
    rows8_pad = num_tiles * tr_rows
    n_pad = rows8_pad * r

    sentinel = c                # anything outside [0, C) never matches a lane class id
    pred_p = jnp.pad(pred, ((0, n_pad - n), (0, 0)))
    tgt_p = jnp.pad(target, (0, n_pad - n), constant_values=sentinel)
    pred2 = pred_p.reshape(rows8_pad, rc)                     # (N/8, 8*C) lane-dense
    tgt2 = tgt_p.reshape(rows8_pad, r)                        # (N/8, 8)
    w_tiled = jnp.tile(weight.reshape(1, c), (1, r))          # (1, 8*C)
    lane_cls = (jnp.arange(rc, dtype=jnp.int32) % c).astype(jnp.float32).reshape(1, rc)
    rep = (jnp.arange(rc, dtype=jnp.int32)[None, :] // c
           == jnp.arange(r, dtype=jnp.int32)[:, None]).astype(jnp.float32)   # (8, 8*C)

    # ---- explicit VMEM budget (double-buffered tiles + resident constants) ----
    pad128 = lambda x: _round_up(x, 128)
    p_elt = 2 if pred2.dtype == jnp.bfloat16 else 4
    tile_bytes = tr_rows * (p_elt * pad128(rc) + 4 * pad128(r))
    const_bytes = 4 * (2 * pad128(rc) + r * pad128(rc) + b * k * pad128(k) + 8 * 128)
    vmem_limit = int(min(max(4 * tile_bytes + 2 * const_bytes + (1 << 20), 16 << 20),
                         48 << 20))        # <= 48 MiB: headroom on v7x's 64 MiB VMEM

    partials = pl.pallas_call(
        _make_kernel(strip, tr_rows // strip),
        out_shape=jax.ShapeDtypeStruct((num_tiles * 8, 128), jnp.float32),
        grid_spec=pl.GridSpec(
            grid=(num_tiles,),
            in_specs=[
                pl.BlockSpec((tr_rows, rc), lambda i: (i, 0)),
                pl.BlockSpec((tr_rows, r), lambda i: (i, 0)),
                pl.BlockSpec((1, rc), lambda i: (0, 0)),
                pl.BlockSpec((1, rc), lambda i: (0, 0)),
                pl.BlockSpec((r, rc), lambda i: (0, 0)),
                pl.BlockSpec((b, k, k), lambda i: (0, 0, 0)),
            ],
            out_specs=pl.BlockSpec((8, 128), lambda i: (i, 0)),
        ),
        compiler_params=pltpu.CompilerParams(
            dimension_semantics=("parallel",),
            vmem_limit_bytes=vmem_limit,
        ),
    )(pred2, tgt2, w_tiled, lane_cls, rep, trans_feat)

    parts = partials.reshape(num_tiles, 8, 128)
    nll = jnp.sum(parts[:, 0, 0]) / jnp.sum(parts[:, 0, 1])
    mat_diff_loss = jnp.sum(parts[:, 0, 2]) / jnp.float32(b)
    return nll + mat_diff_loss * jnp.float32(MAT_DIFF_LOSS_SCALE)


def _reference(pred, target, trans_feat, weight):
    # pure-JAX reference (torch F.nll_loss + feature_transform_regularizer semantics)
    picked_logp = pred[jnp.arange(pred.shape[0]), target]
    picked_w = weight[target]
    nll = jnp.sum(-picked_logp * picked_w) / jnp.sum(picked_w)
    K = trans_feat.shape[1]
    gram = jnp.einsum('bij,bkj->bik', trans_feat, trans_feat)
    diff = gram - jnp.eye(K, dtype=jnp.float32)[None]
    fro = jnp.sqrt(jnp.sum(diff * diff, axis=(1, 2)))
    return nll + jnp.mean(fro) * MAT_DIFF_LOSS_SCALE


if __name__ == "__main__":
    key = jax.random.PRNGKey(0)
    k1, k2, k3, k4 = jax.random.split(key, 4)

    B, P, C, K = 2, 16, 13, 16          # batch, points/sample, classes, transform dim
    N = B * P                           # pred rows (flattened batch*points)

    logits = jax.random.normal(k1, (N, C), dtype=jnp.float32)
    pred = jax.nn.log_softmax(logits, axis=-1)          # log-probs, like model output
    target = jax.random.randint(k2, (N,), 0, C, dtype=jnp.int32)
    trans_feat = jax.random.normal(k3, (B, K, K), dtype=jnp.float32) * 0.1
    weight = jax.random.uniform(k4, (C,), dtype=jnp.float32, minval=0.5, maxval=1.5)

    total = jax.block_until_ready(get_loss(pred, target, trans_feat, weight))
    ref = _reference(pred, target, trans_feat, weight)
    assert jnp.allclose(total, ref, rtol=1e-4, atol=1e-5), (total, ref)

    # Larger, padded case: exercises multi-tile grid, even-tile padding and the
    # in-kernel strip loop (n_strips > 1).
    N2 = 5000
    logits2 = jax.random.normal(k1, (N2, C), dtype=jnp.float32)
    pred_big = jax.nn.log_softmax(logits2, axis=-1)
    target_big = jax.random.randint(k2, (N2,), 0, C, dtype=jnp.int32)
    total2 = jax.block_until_ready(
        get_loss(pred_big, target_big, trans_feat, weight, tile_rows=512))
    ref2 = _reference(pred_big, target_big, trans_feat, weight)
    assert jnp.allclose(total2, ref2, rtol=1e-4, atol=1e-5), (total2, ref2)

    print("KERNEL_OK")
</pallas_src>

<mosaic_0001>
module attributes {stable_mosaic.version = 11 : i64} {
  func.func @kernel(%arg0: i32, %arg1: memref<8x104xf32, #tpu.memory_space<vmem>>, %arg2: memref<8x8xi32, #tpu.memory_space<vmem>>, %arg3: memref<1x104xf32, #tpu.memory_space<vmem>>, %arg4: memref<1x104xf32, #tpu.memory_space<vmem>>, %arg5: memref<8x104xf32, #tpu.memory_space<vmem>>, %arg6: memref<2x16x16xf32, #tpu.memory_space<vmem>>, %arg7: memref<8x128xf32, #tpu.memory_space<vmem>>) attributes {dimension_semantics = [#tpu.dimension_semantics<parallel>], iteration_bounds = array<i64: 1>, scalar_prefetch = 0 : i64, scratch_operands = 0 : i64, tpu.core_type = #tpu.core_type<tc>, window_params = [{transform_indices = @transform_0, window_bounds = array<i64: 8, 104>}, {transform_indices = @transform_1, window_bounds = array<i64: 8, 8>}, {pipeline_mode = #tpu.pipeline_mode<synchronous>, transform_indices = @transform_2, window_bounds = array<i64: 1, 104>}, {pipeline_mode = #tpu.pipeline_mode<synchronous>, transform_indices = @transform_3, window_bounds = array<i64: 1, 104>}, {pipeline_mode = #tpu.pipeline_mode<synchronous>, transform_indices = @transform_4, window_bounds = array<i64: 8, 104>}, {pipeline_mode = #tpu.pipeline_mode<synchronous>, transform_indices = @transform_5, window_bounds = array<i64: 2, 16, 16>}, {transform_indices = @transform_6, window_bounds = array<i64: 8, 128>}]} {
    %c0 = arith.constant 0 : index
    %c0_0 = arith.constant 0 : index
    %0 = vector.load %arg3[%c0, %c0_0] : memref<1x104xf32, #tpu.memory_space<vmem>>, vector<1x104xf32>
    %1 = vector.shape_cast %0 : vector<1x104xf32> to vector<1x104xf32>
    %2 = vector.broadcast %1 : vector<1x104xf32> to vector<8x104xf32>
    %c0_1 = arith.constant 0 : index
    %c0_2 = arith.constant 0 : index
    %3 = vector.load %arg4[%c0_1, %c0_2] : memref<1x104xf32, #tpu.memory_space<vmem>>, vector<1x104xf32>
    %4 = vector.shape_cast %3 : vector<1x104xf32> to vector<1x104xf32>
    %5 = vector.broadcast %4 : vector<1x104xf32> to vector<8x104xf32>
    %c0_3 = arith.constant 0 : index
    %c0_4 = arith.constant 0 : index
    %6 = vector.load %arg5[%c0_3, %c0_4] : memref<8x104xf32, #tpu.memory_space<vmem>>, vector<8x104xf32>
    %cst = arith.constant 0.000000e+00 : f32
    %7 = vector.broadcast %cst : f32 to vector<1x104xf32>
    %c0_i32 = arith.constant 0 : i32
    %c8_i32 = arith.constant 8 : i32
    %8 = arith.muli %c0_i32, %c8_i32 : i32
    %9 = tpu.assume_multiple %8, 8 : i32
    %10 = arith.index_cast %9 : i32 to index
    %c0_5 = arith.constant 0 : index
    %11 = vector.load %arg1[%10, %c0_5] : memref<8x104xf32, #tpu.memory_space<vmem>>, vector<8x104xf32>
    %12 = arith.index_cast %9 : i32 to index
    %c0_6 = arith.constant 0 : index
    %13 = vector.load %arg2[%12, %c0_6] : memref<8x8xi32, #tpu.memory_space<vmem>>, vector<8x8xi32>
    %14 = arith.sitofp %13 : vector<8x8xi32> to vector<8x8xf32>
    %cst_7 = arith.constant dense<0.000000e+00> : vector<8x104xf32>
    %15 = tpu.matmul %14, %6, %cst_7 {dimension_numbers = #tpu.dot_dimension_numbers<[1], [0], [0], [1], [0, 0, 1, 1], [], []>} : vector<8x8xf32>, vector<8x104xf32>, vector<8x104xf32> -> vector<8x104xf32>
    %16 = arith.cmpf oeq, %15, %5 : vector<8x104xf32>
    %cst_8 = arith.constant 0.000000e+00 : f32
    %17 = vector.broadcast %cst_8 : f32 to vector<8x104xf32>
    %18 = arith.select %16, %2, %17 : vector<8x104xi1>, vector<8x104xf32>
    %19 = arith.mulf %11, %18 : vector<8x104xf32>
    %cst_9 = arith.constant dense<0.000000e+00> : vector<104xf32>
    %20 = vector.multi_reduction <add>, %19, %cst_9 [0] : vector<8x104xf32> to vector<104xf32>
    %21 = vector.shape_cast %20 : vector<104xf32> to vector<1x104xf32>
    %22 = arith.addf %7, %21 : vector<1x104xf32>
    %cst_10 = arith.constant dense<0.000000e+00> : vector<104xf32>
    %23 = vector.multi_reduction <add>, %18, %cst_10 [0] : vector<8x104xf32> to vector<104xf32>
    %24 = vector.shape_cast %23 : vector<104xf32> to vector<1x104xf32>
    %25 = arith.addf %7, %24 : vector<1x104xf32>
    %c1_i32 = arith.constant 1 : i32
    %26 = vector.shape_cast %22 : vector<1x104xf32> to vector<1x1x104xf32>
    %cst_11 = arith.constant dense<0.000000e+00> : vector<1xf32>
    %27 = vector.multi_reduction <add>, %26, %cst_11 [1, 2] : vector<1x1x104xf32> to vector<1xf32>
    %28 = vector.shape_cast %27 : vector<1xf32> to vector<1x1x1xf32>
    %29 = vector.extract %28[0, 0, 0] : f32 from vector<1x1x1xf32>
    %cst_12 = arith.constant 0.000000e+00 : f32
    %30 = arith.subf %cst_12, %29 : f32
    %31 = vector.shape_cast %25 : vector<1x104xf32> to vector<1x1x104xf32>
    %cst_13 = arith.constant dense<0.000000e+00> : vector<1xf32>
    %32 = vector.multi_reduction <add>, %31, %cst_13 [1, 2] : vector<1x1x104xf32> to vector<1xf32>
    %33 = vector.shape_cast %32 : vector<1xf32> to vector<1x1x1xf32>
    %34 = vector.extract %33[0, 0, 0] : f32 from vector<1x1x1xf32>
    %35 = tpu.iota {dimensions = array<i32: 1>} : vector<8x128xi32>
    %c0_i32_14 = arith.constant 0 : i32
    %36 = vector.broadcast %c0_i32_14 : i32 to vector<8x128xi32>
    %37 = arith.cmpi eq, %35, %36 : vector<8x128xi32>
    %cst_15 = arith.constant 0.000000e+00 : f32
    %38 = vector.broadcast %30 : f32 to vector<8x128xf32>
    %39 = vector.broadcast %cst_15 : f32 to vector<8x128xf32>
    %40 = arith.select %37, %38, %39 : vector<8x128xi1>, vector<8x128xf32>
    %c1_i32_16 = arith.constant 1 : i32
    %41 = vector.broadcast %c1_i32_16 : i32 to vector<8x128xi32>
    %42 = arith.cmpi eq, %35, %41 : vector<8x128xi32>
    %cst_17 = arith.constant 0.000000e+00 : f32
    %43 = vector.broadcast %34 : f32 to vector<8x128xf32>
    %44 = vector.broadcast %cst_17 : f32 to vector<8x128xf32>
    %45 = arith.select %42, %43, %44 : vector<8x128xi1>, vector<8x128xf32>
    %46 = arith.addf %40, %45 : vector<8x128xf32>
    %c0_i32_18 = arith.constant 0 : i32
    %47 = arith.cmpi slt, %arg0, %c0_i32_18 : i32
    %48 = arith.extui %47 : i1 to i32
    %c0_i32_19 = arith.constant 0 : i32
    %49 = arith.cmpi ne, %48, %c0_i32_19 : i32
    scf.if %49 {
      %c0_22 = arith.constant 0 : index
      %c0_23 = arith.constant 0 : index
      %53 = vector.load %arg7[%c0_22, %c0_23] : memref<8x128xf32, #tpu.memory_space<vmem>>, vector<8x128xf32>
      tpu.vector_store %arg7[%c0_22, %c0_23], %46 {strides = array<i32>} : memref<8x128xf32, #tpu.memory_space<vmem>>, vector<8x128xf32>,
    } else {
    }
    %c0_i32_20 = arith.constant 0 : i32
    %50 = arith.cmpi eq, %arg0, %c0_i32_20 : i32
    %51 = arith.extui %50 : i1 to i32
    %c0_i32_21 = arith.constant 0 : i32
    %52 = arith.cmpi ne, %51, %c0_i32_21 : i32
    scf.if %52 {
      %c0_22 = arith.constant 0 : index
      %c0_23 = arith.constant 0 : index
      %c0_24 = arith.constant 0 : index
      %53 = vector.load %arg6[%c0_22, %c0_23, %c0_24] : memref<2x16x16xf32, #tpu.memory_space<vmem>>, vector<2x16x16xf32>
      "tpu.trace_start"() <{level = 10 : i32, message = "bij,bkj->bik"}> : () -> ()
      %cst_25 = arith.constant dense<0.000000e+00> : vector<2x16x16xf32>
      %54 = tpu.matmul %53, %53, %cst_25 {dimension_numbers = #tpu.dot_dimension_numbers<[2], [2], [1], [1], [0, 0, 0, 1, 1, 1], [0], [0]>} : vector<2x16x16xf32>, vector<2x16x16xf32>, vector<2x16x16xf32> -> vector<2x16x16xf32>
      "tpu.trace_stop"() : () -> ()
      %55 = tpu.iota {dimensions = array<i32: 1>} : vector<1x16x16xi32>
      %56 = tpu.iota {dimensions = array<i32: 2>} : vector<1x16x16xi32>
      %57 = arith.cmpi eq, %55, %56 : vector<1x16x16xi32>
      %cst_26 = arith.constant 1.000000e+00 : f32
      %cst_27 = arith.constant 0.000000e+00 : f32
      %58 = vector.broadcast %cst_26 : f32 to vector<1x16x16xf32>
      %59 = vector.broadcast %cst_27 : f32 to vector<1x16x16xf32>
      %60 = arith.select %57, %58, %59 : vector<1x16x16xi1>, vector<1x16x16xf32>
      %61 = vector.broadcast %60 : vector<1x16x16xf32> to vector<2x16x16xf32>
      %62 = arith.subf %54, %61 : vector<2x16x16xf32>
      %63 = arith.mulf %62, %62 : vector<2x16x16xf32>
      %cst_28 = arith.constant dense<0.000000e+00> : vector<2x16xf32>
      %64 = vector.multi_reduction <add>, %63, %cst_28 [2] : vector<2x16x16xf32> to vector<2x16xf32>
      %cst_29 = arith.constant dense<0.000000e+00> : vector<2xf32>
      %65 = vector.multi_reduction <add>, %64, %cst_29 [1] : vector<2x16xf32> to vector<2xf32>
      %66 = vector.shape_cast %65 : vector<2xf32> to vector<2x1xf32>
      %67 = math.sqrt %66 : vector<2x1xf32>
      %c2_i32 = arith.constant 2 : i32
      %68 = vector.broadcast %c2_i32 : i32 to vector<8x128xi32>
      %69 = arith.cmpi eq, %35, %68 : vector<8x128xi32>
      %70 = vector.shape_cast %67 : vector<2x1xf32> to vector<1x2x1xf32>
      %cst_30 = arith.constant dense<0.000000e+00> : vector<1xf32>
      %71 = vector.multi_reduction <add>, %70, %cst_30 [1, 2] : vector<1x2x1xf32> to vector<1xf32>
      %72 = vector.shape_cast %71 : vector<1xf32> to vector<1x1x1xf32>
      %73 = vector.extract %72[0, 0, 0] : f32 from vector<1x1x1xf32>
      %cst_31 = arith.constant 0.000000e+00 : f32
      %74 = vector.broadcast %73 : f32 to vector<8x128xf32>
      %75 = vector.broadcast %cst_31 : f32 to vector<8x128xf32>
      %76 = arith.select %69, %74, %75 : vector<8x128xi1>, vector<8x128xf32>
      %77 = arith.addf %46, %76 : vector<8x128xf32>
      %c0_32 = arith.constant 0 : index
      %c0_33 = arith.constant 0 : index
      %78 = vector.load %arg7[%c0_32, %c0_33] : memref<8x128xf32, #tpu.memory_space<vmem>>, vector<8x128xf32>
      tpu.vector_store %arg7[%c0_32, %c0_33], %77 {strides = array<i32>} : memref<8x128xf32, #tpu.memory_space<vmem>>, vector<8x128xf32>,
    } else {
    }
    return
  }
  func.func @transform_0(%arg0: i32) -> (i32, i32) {
    %c0_i32 = arith.constant 0 : i32
    %c0_i32_0 = arith.constant 0 : i32
    return %arg0, %c0_i32 : i32, i32
  }
  func.func @transform_1(%arg0: i32) -> (i32, i32) {
    %c0_i32 = arith.constant 0 : i32
    %c0_i32_0 = arith.constant 0 : i32
    return %arg0, %c0_i32 : i32, i32
  }
  func.func @transform_2(%arg0: i32) -> (i32, i32) {
    %c0_i32 = arith.constant 0 : i32
    %c0_i32_0 = arith.constant 0 : i32
    %c0_i32_1 = arith.constant 0 : i32
    return %c0_i32, %c0_i32_0 : i32, i32
  }
  func.func @transform_3(%arg0: i32) -> (i32, i32) {
    %c0_i32 = arith.constant 0 : i32
    %c0_i32_0 = arith.constant 0 : i32
    %c0_i32_1 = arith.constant 0 : i32
    return %c0_i32, %c0_i32_0 : i32, i32
  }
  func.func @transform_4(%arg0: i32) -> (i32, i32) {
    %c0_i32 = arith.constant 0 : i32
    %c0_i32_0 = arith.constant 0 : i32
    %c0_i32_1 = arith.constant 0 : i32
    return %c0_i32, %c0_i32_0 : i32, i32
  }
  func.func @transform_5(%arg0: i32) -> (i32, i32, i32) {
    %c0_i32 = arith.constant 0 : i32
    %c0_i32_0 = arith.constant 0 : i32
    %c0_i32_1 = arith.constant 0 : i32
    %c0_i32_2 = arith.constant 0 : i32
    return %c0_i32, %c0_i32_0, %c0_i32_1 : i32, i32, i32
  }
  func.func @transform_6(%arg0: i32) -> (i32, i32) {
    %c0_i32 = arith.constant 0 : i32
    %c0_i32_0 = arith.constant 0 : i32
    return %arg0, %c0_i32 : i32, i32
  }
}

</mosaic_0001>

<llo_original>
// kernel: tpu_custom_call.1
$region0: #{tpu_custom_call.1}
  #allocation0 [shape = 'u32[]', space=smem, size = 0x4, offset = 0x4, fixed_abs, tag = 'smem constant byte address 0x4 - core index']
  #allocation1 [shape = 'u32[144,128]{1,0:T(1,128)}', space=vmem, size = 0x12000, scoped, tag = 'internal scratch']
  %s0 = inlined_call_operand.hbm [shape: f32[8,104], index: 0, kind: input, shape index: {}]
  %s1 = inlined_call_operand.hbm [shape: s32[8,8], index: 1, kind: input, shape index: {}]
  %s2 = inlined_call_operand.vmem [shape: f32[1,104], index: 2, kind: input, shape index: {}]
  %s3 = inlined_call_operand.vmem [shape: f32[1,104], index: 3, kind: input, shape index: {}]
  %s4 = inlined_call_operand.vmem [shape: f32[8,104], index: 4, kind: input, shape index: {}]
  %s5 = inlined_call_operand.hbm [shape: f32[2,16,16], index: 5, kind: input, shape index: {}]
  %s6 = inlined_call_operand.hbm [shape: f32[8,128], index: 6, kind: output, shape index: {}]
  %s7 = sld [smem:[#allocation0]]
  $region54: #{tpu_custom_call.1} parent=0
    _
  %s9 = ssub.s32 1, %s7
  %s10 = scalar_select 0, %s9, %s7
  $region1: #{tpu_custom_call.1} parent=0
    #allocation2 [shape = 'u8[4096]{0}', space=vmem, size = 0x1000, scoped, tag = 'input window, operand 0, single buffered']
    #allocation3 [shape = 's32[1]{0}', space=sflag, size = 0x4, scoped, tag = 'scoped memory for tpu_custom_call.1']
    #allocation4 [shape = 's32[1]{0}', space=sflag, size = 0x4, scoped, tag = 'scoped memory for tpu_custom_call.1']
    #allocation5 [shape = 'u8[4096]{0}', space=vmem, size = 0x1000, scoped, tag = 'input window, operand 1, single buffered']
    #allocation6 [shape = 's32[1]{0}', space=sflag, size = 0x4, scoped, tag = 'scoped memory for tpu_custom_call.1']
    #allocation7 [shape = 'u8[16384]{0}', space=vmem, size = 0x4000, scoped, tag = 'input window, operand 5, single buffered']
    #allocation8 [shape = 'u8[4096]{0}', space=vmem, size = 0x1000, scoped, tag = 'output window, operand 0, single buffered']
    %11 = vsyncpa [#allocation3], 0
    %12 = vsyncpa [#allocation6], 0
    %13 = vsyncpa [#allocation4], 0
    // Predicated region
    $region2: #{tpu_custom_call.1} parent=1 // pred_check
      _
    $region3: #{tpu_custom_call.1} parent=1 // pred_check_branch
      %15 = sbr.rel (0) target = $region5
    $region4: #{tpu_custom_call.1} parent=1 // pred_region
      %s17 = ssub.s32 128, 128
      %18 = vsyncadd [#allocation3], %s17
      %s20 = sshll.u32 [#allocation2], 4
      %s21 = int_to_ptr.vmem [resolvable:$true] %s20
      %23 = dma.hbm_to_vmem [thread:$0]  %s0, 128, %s21, [#allocation3]
    $region5: #{tpu_custom_call.1} parent=1 // pred_fallthru
      _
    // Predicated region
    $region6: #{tpu_custom_call.1} parent=1 // pred_check
      _
    $region7: #{tpu_custom_call.1} parent=1 // pred_check_branch
      %25 = sbr.rel (0) target = $region9
    $region8: #{tpu_custom_call.1} parent=1 // pred_region
      %s27 = ssub.s32 128, 128
      %28 = vsyncadd [#allocation6], %s27
      %s30 = sshll.u32 [#allocation5], 4
      %s31 = int_to_ptr.vmem [resolvable:$true] %s30
      %33 = dma.hbm_to_vmem [thread:$0]  %s1, 128, %s31, [#allocation6]
    $region9: #{tpu_custom_call.1} parent=1 // pred_fallthru
      _
    // Predicated region
    $region10: #{tpu_custom_call.1} parent=1 // pred_check
      _
    $region11: #{tpu_custom_call.1} parent=1 // pred_check_branch
      %35 = sbr.rel (0) target = $region13
    $region12: #{tpu_custom_call.1} parent=1 // pred_region
      _
    $region13: #{tpu_custom_call.1} parent=1 // pred_fallthru
      _
    // Predicated region
    $region14: #{tpu_custom_call.1} parent=1 // pred_check
      _
    $region15: #{tpu_custom_call.1} parent=1 // pred_check_branch
      %37 = sbr.rel (0) target = $region17
    $region16: #{tpu_custom_call.1} parent=1 // pred_region
      _
    $region17: #{tpu_custom_call.1} parent=1 // pred_fallthru
      _
    // Predicated region
    $region18: #{tpu_custom_call.1} parent=1 // pred_check
      _
    $region19: #{tpu_custom_call.1} parent=1 // pred_check_branch
      %39 = sbr.rel (0) target = $region21
    $region20: #{tpu_custom_call.1} parent=1 // pred_region
      _
    $region21: #{tpu_custom_call.1} parent=1 // pred_fallthru
      _
    // Predicated region
    $region22: #{tpu_custom_call.1} parent=1 // pred_check
      _
    $region23: #{tpu_custom_call.1} parent=1 // pred_check_branch
      %41 = sbr.rel (0) target = $region25
    $region24: #{tpu_custom_call.1} parent=1 // pred_region
      %s43 = ssub.s32 512, 512
      %44 = vsyncadd [#allocation6], %s43
      %s45 = sshll.u32 [#allocation7], 4
      %s46 = int_to_ptr.vmem [resolvable:$true] %s45
      %51 = dma.hbm_to_vmem [thread:$0]  %s5, 512, %s46, [#allocation6], 128, 128, 8
    $region25: #{tpu_custom_call.1} parent=1 // pred_fallthru
      _
    // Predicated region
    $region26: #{tpu_custom_call.1} parent=1 // pred_check
      _
    $region27: #{tpu_custom_call.1} parent=1 // pred_check_branch
      %53 = sbr.rel (0) target = $region29
    $region28: #{tpu_custom_call.1} parent=1 // pred_region
      %54 = dma.done [#allocation3], 128
    $region29: #{tpu_custom_call.1} parent=1 // pred_fallthru
      _
    // Predicated region
    $region30: #{tpu_custom_call.1} parent=1 // pred_check
      _
    $region31: #{tpu_custom_call.1} parent=1 // pred_check_branch
      %56 = sbr.rel (0) target = $region33
    $region32: #{tpu_custom_call.1} parent=1 // pred_region
      %57 = dma.done [#allocation6], 128
    $region33: #{tpu_custom_call.1} parent=1 // pred_fallthru
      _
    // Predicated region
    $region34: #{tpu_custom_call.1} parent=1 // pred_check
      _
    $region35: #{tpu_custom_call.1} parent=1 // pred_check_branch
      %59 = sbr.rel (0) target = $region37
    $region36: #{tpu_custom_call.1} parent=1 // pred_region
      %60 = dma.done [#allocation6], 512
    $region37: #{tpu_custom_call.1} parent=1 // pred_fallthru
      _
    %v61 = vld [vmem:[%s2] sm:$0x1]
    %v63 = vlaneseq
    %v64 = vshrl.u32 %v63, 7
    %v65 = vsub.s32 0, %v64
    %v66 = vrot.slane %v61, %v65
    %v68 = vld [vmem:[%s3] sm:$0x1]
    %v70 = vlaneseq
    %v71 = vshrl.u32 %v70, 7
    %v72 = vsub.s32 0, %v71
    %v73 = vrot.slane %v68, %v72
    %v75 = vld [vmem:[%s4] sm:$0xff]
    %v76 = vld [vmem:[#allocation2] sm:$0xff]
    %v77 = vld [vmem:[#allocation5] sm:$0xff]
    %v78 = vcvt.s32.f32 %v77
    %vm79 = vcmask 64512
    %v81 = vsel %vm79, %v78, 0
    %83 = vmatprep.subr.mxu0 0.0
    %84 = vmatpush1.msra.mxu0 %v75
    %85 = vmatprep.subr.mxu0 0.0
    %86 = vmatpush1.msra.mxu0 0.0
    %87 = vmatprep.subr.mxu0 0.0
    %88 = vmatpush1.msra.mxu0 0.0
    %89 = vmatprep.subr.mxu0 0.0
    %90 = vmatpush1.msra.mxu0 0.0
    %91 = vmatprep.subr.mxu0 0.0
    %92 = vmatpush1.msra.mxu0 0.0
    %93 = vmatprep.subr.mxu0 0.0
    %94 = vmatpush1.msra.mxu0 0.0
    %95 = vmatprep.subr.mxu0 0.0
    %96 = vmatpush1.msra.mxu0 0.0
    %97 = vmatprep.subr.mxu0 0.0
    %98 = vmatpush1.msra.mxu0 0.0
    %99 = vmatprep.subr.mxu0 0.0
    %100 = vmatpush1.msra.mxu0 0.0
    %101 = vmatprep.subr.mxu0 0.0
    %102 = vmatpush1.msra.mxu0 0.0
    %103 = vmatprep.subr.mxu0 0.0
    %104 = vmatpush1.msra.mxu0 0.0
    %105 = vmatprep.subr.mxu0 0.0
    %106 = vmatpush1.msra.mxu0 0.0
    %107 = vmatprep.subr.mxu0 0.0
    %108 = vmatpush1.msra.mxu0 0.0
    %109 = vmatprep.subr.mxu0 0.0
    %110 = vmatpush1.msra.mxu0 0.0
    %111 = vmatprep.subr.mxu0 0.0
    %112 = vmatpush1.msra.mxu0 0.0
    %113 = vmatprep.subr.mxu0 0.0
    %114 = vmatpush1.msra.mxu0 0.0
    %115 = vmatprep.subr.mxu0 0.0
    %116 = vmatpush1.msra.mxu0 0.0
    %117 = vmatprep.subr.mxu0 0.0
    %118 = vmatpush1.msra.mxu0 0.0
    %119 = vmatprep.subr.mxu0 0.0
    %120 = vmatpush1.msra.mxu0 0.0
    %121 = vmatprep.subr.mxu0 0.0
    %122 = vmatpush1.msra.mxu0 0.0
    %123 = vmatprep.subr.mxu0 0.0
    %124 = vmatpush1.msra.mxu0 0.0
    %125 = vmatprep.subr.mxu0 0.0
    %126 = vmatpush1.msra.mxu0 0.0
    %127 = vmatprep.subr.mxu0 0.0
    %128 = vmatpush1.msra.mxu0 0.0
    %129 = vmatprep.subr.mxu0 0.0
    %130 = vmatpush1.msra.mxu0 0.0
    %131 = vmatprep.subr.mxu0 0.0
    %132 = vmatpush1.msra.mxu0 0.0
    %133 = vmatprep.subr.mxu0 0.0
    %134 = vmatpush1.msra.mxu0 0.0
    %135 = vmatprep.subr.mxu0 0.0
    %136 = vmatpush1.msra.mxu0 0.0
    %137 = vmatprep.subr.mxu0 0.0
    %138 = vmatpush1.msra.mxu0 0.0
    %139 = vmatprep.subr.mxu0 0.0
    %140 = vmatpush1.msra.mxu0 0.0
    %141 = vmatprep.subr.mxu0 0.0
    %142 = vmatpush1.msra.mxu0 0.0
    %143 = vmatprep.subr.mxu0 0.0
    %144 = vmatpush1.msra.mxu0 0.0
    %145 = vmatprep.subr.mxu0 0.0
    %146 = vmatpush1.msra.mxu0 0.0
    %147 = vmatprep.mubr.f32.mxu0 0.0
    %148 = vmatmul.mubr.f32.gmra.mrb[0].mxu0 %v81
    %v149 = vpop.f32.mrb[0].mxu0
    %v150 = vadd.f32 0.0, %v149
    %v151 = vpop.f32.mrb[0].mxu0
    %152 = vdwg.mxu0
    %vm153 = vcmp.eq.f32.partialorder %v150, %v73
    %v154 = vsel %vm153, %v66, 0.0
    %v155 = vmul.f32 %v76, %v154
    %vm156 = vcmask 850944
    %v157 = vsel %vm156, %v155, 0.0
    %v158 = vrot.slane %v157, 4
    %v159 = vadd.f32 %v157, %v158
    %v160 = vrot.slane %v159, 2
    %v161 = vadd.f32 %v159, %v160
    %v162 = vrot.slane %v161, 1
    %v163 = vadd.f32 %v161, %v162
    %v164 = vadd.f32 %v163, 0.0
    %v165 = vsel %vm156, %v154, 0.0
    %v166 = vrot.slane %v165, 4
    %v167 = vadd.f32 %v165, %v166
    %v168 = vrot.slane %v167, 2
    %v169 = vadd.f32 %v167, %v168
    %v170 = vrot.slane %v169, 1
    %v171 = vadd.f32 %v169, %v170
    %v172 = vadd.f32 %v171, 0.0
    %vm173 = vcmask 843776
    %v174 = vsel %vm173, %v164, 0.0
    %175 = vadd.xlane.f32.xlu0 %v174
    %v176 = vpop.xlane.xlu0 %175
    %v177 = vrot.slane %v176, 4
    %v178 = vadd.f32 %v176, %v177
    %v179 = vrot.slane %v178, 2
    %v180 = vadd.f32 %v178, %v179
    %v181 = vrot.slane %v180, 1
    %v182 = vadd.f32 %v180, %v181
    %s183 = vtos %v182
    %s184 = ssub.f32 0.0, %s183
    %v185 = vsel %vm173, %v172, 0.0
    %186 = vadd.xlane.f32.xlu0 %v185
    %v187 = vpop.xlane.xlu0 %186
    %v188 = vrot.slane %v187, 4
    %v189 = vadd.f32 %v187, %v188
    %v190 = vrot.slane %v189, 2
    %v191 = vadd.f32 %v189, %v190
    %v192 = vrot.slane %v191, 1
    %v193 = vadd.f32 %v191, %v192
    %s194 = vtos %v193
    %v195 = vlaneseq
    %v196 = vand.u32 %v195, 127
    %vm197 = vcmp.eq.s32.totalorder %v196, 0
    %v198 = vstv %s184
    %v199 = vsel %vm197, %v198, 0.0
    %vm200 = vcmp.eq.s32.totalorder %v196, 1
    %v201 = vstv %s194
    %v202 = vsel %vm200, %v201, 0.0
    %v203 = vadd.f32 %v199, %v202
    %p204 = scmp.lt.s32.totalorder 0, 0
    // Predicated region
    $region38: #{tpu_custom_call.1} parent=1 // pred_check
      %p205 = pneg %p204
    $region39: #{tpu_custom_call.1} parent=1 // pred_check_branch
      %207 = sbr.rel (%p205) target = $region41
    $region40: #{tpu_custom_call.1} parent=1 // pred_region
      %208 = vst [vmem:[#allocation8] sm:$0xff] %v203
    $region41: #{tpu_custom_call.1} parent=1 // pred_fallthru
      _
    %p209 = scmp.eq.s32.totalorder 0, 0
    // Predicated region
    $region42: #{tpu_custom_call.1} parent=1 // pred_check
      %p210 = pneg %p209
    $region43: #{tpu_custom_call.1} parent=1 // pred_check_branch
      %212 = sbr.rel (%p210) target = $region45
    $region44: #{tpu_custom_call.1} parent=1 // pred_region
      %v213 = vld [vmem:[#allocation7] sm:$0xff]
      %v214 = vld [vmem:[#allocation7 + $0x8] sm:$0xff]
      %v215 = vld [vmem:[#allocation7 + $0x10] sm:$0xff]
      %v216 = vld [vmem:[#allocation7 + $0x18] sm:$0xff]
      %vm217 = vcmask 130048
      %v219 = vsel %vm217, %v213, 0
      %v222 = vsel %vm217, %v214, 0
      %224 = vmatprep.subr.mxu0 0.0
      %225 = vmatpush1.xpose.msra.mxu0 %v219
      %226 = vmatprep.subr.mxu0 0.0
      %227 = vmatpush1.xpose.msra.mxu0 %v222
      %228 = vmatprep.subr.mxu0 0.0
      %229 = vmatpush1.xpose.msra.mxu0 0.0
      %230 = vmatprep.subr.mxu0 0.0
      %231 = vmatpush1.xpose.msra.mxu0 0.0
      %232 = vmatprep.subr.mxu0 0.0
      %233 = vmatpush1.xpose.msra.mxu0 0.0
      %234 = vmatprep.subr.mxu0 0.0
      %235 = vmatpush1.xpose.msra.mxu0 0.0
      %236 = vmatprep.subr.mxu0 0.0
      %237 = vmatpush1.xpose.msra.mxu0 0.0
      %238 = vmatprep.subr.mxu0 0.0
      %239 = vmatpush1.xpose.msra.mxu0 0.0
      %240 = vmatprep.subr.mxu0 0.0
      %241 = vmatpush1.xpose.msra.mxu0 0.0
      %242 = vmatprep.subr.mxu0 0.0
      %243 = vmatpush1.xpose.msra.mxu0 0.0
      %244 = vmatprep.subr.mxu0 0.0
      %245 = vmatpush1.xpose.msra.mxu0 0.0
      %246 = vmatprep.subr.mxu0 0.0
      %247 = vmatpush1.xpose.msra.mxu0 0.0
      %248 = vmatprep.subr.mxu0 0.0
      %249 = vmatpush1.xpose.msra.mxu0 0.0
      %250 = vmatprep.subr.mxu0 0.0
      %251 = vmatpush1.xpose.msra.mxu0 0.0
      %252 = vmatprep.subr.mxu0 0.0
      %253 = vmatpush1.xpose.msra.mxu0 0.0
      %254 = vmatprep.subr.mxu0 0.0
      %255 = vmatpush1.xpose.msra.mxu0 0.0
      %256 = vmatprep.subr.mxu0 0.0
      %257 = vmatpush1.xpose.msra.mxu0 0.0
      %258 = vmatprep.subr.mxu0 0.0
      %259 = vmatpush1.xpose.msra.mxu0 0.0
      %260 = vmatprep.subr.mxu0 0.0
      %261 = vmatpush1.xpose.msra.mxu0 0.0
      %262 = vmatprep.subr.mxu0 0.0
      %263 = vmatpush1.xpose.msra.mxu0 0.0
      %264 = vmatprep.subr.mxu0 0.0
      %265 = vmatpush1.xpose.msra.mxu0 0.0
      %266 = vmatprep.subr.mxu0 0.0
      %267 = vmatpush1.xpose.msra.mxu0 0.0
      %268 = vmatprep.subr.mxu0 0.0
      %269 = vmatpush1.xpose.msra.mxu0 0.0
      %270 = vmatprep.subr.mxu0 0.0
      %271 = vmatpush1.xpose.msra.mxu0 0.0
      %272 = vmatprep.subr.mxu0 0.0
      %273 = vmatpush1.xpose.msra.mxu0 0.0
      %274 = vmatprep.subr.mxu0 0.0
      %275 = vmatpush1.xpose.msra.mxu0 0.0
      %276 = vmatprep.subr.mxu0 0.0
      %277 = vmatpush1.xpose.msra.mxu0 0.0
      %278 = vmatprep.subr.mxu0 0.0
      %279 = vmatpush1.xpose.msra.mxu0 0.0
      %280 = vmatprep.subr.mxu0 0.0
      %281 = vmatpush1.xpose.msra.mxu0 0.0
      %282 = vmatprep.subr.mxu0 0.0
      %283 = vmatpush1.xpose.msra.mxu0 0.0
      %284 = vmatprep.subr.mxu0 0.0
      %285 = vmatpush1.xpose.msra.mxu0 0.0
      %286 = vmatprep.subr.mxu0 0.0
      %287 = vmatpush1.xpose.msra.mxu0 0.0
      %288 = vmatprep.mubr.f32.mxu0 0.0
      %289 = vmatmul.mubr.f32.gmra.mrb[0].mxu0 %v219
      %v290 = vpop.f32.mrb[0].mxu0
      %v291 = vadd.f32 0.0, %v290
      %v292 = vpop.f32.mrb[0].mxu0
      %293 = vmatprep.mubr.f32.mxu0 0.0
      %294 = vmatmul.mubr.f32.gmra.mrb[0].mxu0 %v222
      %v295 = vpop.f32.mrb[0].mxu0
      %v296 = vadd.f32 0.0, %v295
      %v297 = vpop.f32.mrb[0].mxu0
      %298 = vdwg.mxu0
      %v300 = vsel %vm217, %v215, 0
      %v303 = vsel %vm217, %v216, 0
      %305 = vmatprep.subr.mxu0 0.0
      %306 = vmatpush1.xpose.msra.mxu0 %v300
      %307 = vmatprep.subr.mxu0 0.0
      %308 = vmatpush1.xpose.msra.mxu0 %v303
      %309 = vmatprep.subr.mxu0 0.0
      %310 = vmatpush1.xpose.msra.mxu0 0.0
      %311 = vmatprep.subr.mxu0 0.0
      %312 = vmatpush1.xpose.msra.mxu0 0.0
      %313 = vmatprep.subr.mxu0 0.0
      %314 = vmatpush1.xpose.msra.mxu0 0.0
      %315 = vmatprep.subr.mxu0 0.0
      %316 = vmatpush1.xpose.msra.mxu0 0.0
      %317 = vmatprep.subr.mxu0 0.0
      %318 = vmatpush1.xpose.msra.mxu0 0.0
      %319 = vmatprep.subr.mxu0 0.0
      %320 = vmatpush1.xpose.msra.mxu0 0.0
      %321 = vmatprep.subr.mxu0 0.0
      %322 = vmatpush1.xpose.msra.mxu0 0.0
      %323 = vmatprep.subr.mxu0 0.0
      %324 = vmatpush1.xpose.msra.mxu0 0.0
      %325 = vmatprep.subr.mxu0 0.0
      %326 = vmatpush1.xpose.msra.mxu0 0.0
      %327 = vmatprep.subr.mxu0 0.0
      %328 = vmatpush1.xpose.msra.mxu0 0.0
      %329 = vmatprep.subr.mxu0 0.0
      %330 = vmatpush1.xpose.msra.mxu0 0.0
      %331 = vmatprep.subr.mxu0 0.0
      %332 = vmatpush1.xpose.msra.mxu0 0.0
      %333 = vmatprep.subr.mxu0 0.0
      %334 = vmatpush1.xpose.msra.mxu0 0.0
      %335 = vmatprep.subr.mxu0 0.0
      %336 = vmatpush1.xpose.msra.mxu0 0.0
      %337 = vmatprep.subr.mxu0 0.0
      %338 = vmatpush1.xpose.msra.mxu0 0.0
      %339 = vmatprep.subr.mxu0 0.0
      %340 = vmatpush1.xpose.msra.mxu0 0.0
      %341 = vmatprep.subr.mxu0 0.0
      %342 = vmatpush1.xpose.msra.mxu0 0.0
      %343 = vmatprep.subr.mxu0 0.0
      %344 = vmatpush1.xpose.msra.mxu0 0.0
      %345 = vmatprep.subr.mxu0 0.0
      %346 = vmatpush1.xpose.msra.mxu0 0.0
      %347 = vmatprep.subr.mxu0 0.0
      %348 = vmatpush1.xpose.msra.mxu0 0.0
      %349 = vmatprep.subr.mxu0 0.0
      %350 = vmatpush1.xpose.msra.mxu0 0.0
      %351 = vmatprep.subr.mxu0 0.0
      %352 = vmatpush1.xpose.msra.mxu0 0.0
      %353 = vmatprep.subr.mxu0 0.0
      %354 = vmatpush1.xpose.msra.mxu0 0.0
      %355 = vmatprep.subr.mxu0 0.0
      %356 = vmatpush1.xpose.msra.mxu0 0.0
      %357 = vmatprep.subr.mxu0 0.0
      %358 = vmatpush1.xpose.msra.mxu0 0.0
      %359 = vmatprep.subr.mxu0 0.0
      %360 = vmatpush1.xpose.msra.mxu0 0.0
      %361 = vmatprep.subr.mxu0 0.0
      %362 = vmatpush1.xpose.msra.mxu0 0.0
      %363 = vmatprep.subr.mxu0 0.0
      %364 = vmatpush1.xpose.msra.mxu0 0.0
      %365 = vmatprep.subr.mxu0 0.0
      %366 = vmatpush1.xpose.msra.mxu0 0.0
      %367 = vmatprep.subr.mxu0 0.0
      %368 = vmatpush1.xpose.msra.mxu0 0.0
      %369 = vmatprep.mubr.f32.mxu0 0.0
      %370 = vmatmul.mubr.f32.gmra.mrb[0].mxu0 %v300
      %v371 = vpop.f32.mrb[0].mxu0
      %v372 = vadd.f32 0.0, %v371
      %v373 = vpop.f32.mrb[0].mxu0
      %374 = vmatprep.mubr.f32.mxu0 0.0
      %375 = vmatmul.mubr.f32.gmra.mrb[0].mxu0 %v303
      %v376 = vpop.f32.mrb[0].mxu0
      %v377 = vadd.f32 0.0, %v376
      %v378 = vpop.f32.mrb[0].mxu0
      %379 = vdwg.mxu0
      %v380 = vlaneseq
      %v381 = vshrl.u32 %v380, 7
      %v382 = vadd.s32 %v381, 8
      %vm383 = vcmp.eq.s32.totalorder %v381, %v196
      %vm384 = vcmp.eq.s32.totalorder %v382, %v196
      %v385 = vsel %vm383, 1.0, 0.0
      %v386 = vsel %vm384, 1.0, 0.0
      %v387 = vsub.f32 %v291, %v385
      %v388 = vsub.f32 %v296, %v386
      %v389 = vsub.f32 %v372, %v385
      %v390 = vsub.f32 %v377, %v386
      %v391 = vmul.f32 %v387, %v387
      %v392 = vmul.f32 %v388, %v388
      %v393 = vmul.f32 %v389, %v389
      %v394 = vmul.f32 %v390, %v390
      %v395 = vsel %vm217, %v391, 0.0
      %396 = vadd.xlane.f32.xlu0 %v395
      %v397 = vpop.xlane.xlu0 %396
      %v398 = vsel %vm217, %v392, 0.0
      %399 = vadd.xlane.f32.xlu0 %v398
      %v400 = vpop.xlane.xlu0 %399
      %v401 = vsel %vm217, %v393, 0.0
      %402 = vadd.xlane.f32.xlu0 %v401
      %v403 = vpop.xlane.xlu0 %402
      %v404 = vsel %vm217, %v394, 0.0
      %405 = vadd.xlane.f32.xlu0 %v404
      %v406 = vpop.xlane.xlu0 %405
      %v411 = vlaneseq
      %v412 = vshrl.u32 %v411, 7
      %v413 = vsub.s32 %v196, %v412
      %v414 = vrot.slane %v397, %v413
      %v415 = vadd.s32 %v196, 4294967288
      %v416 = vlaneseq
      %v417 = vshrl.u32 %v416, 7
      %v418 = vsub.s32 %v415, %v417
      %v419 = vrot.slane %v400, %v418
      %vm420 = vcmask 130112
      %v421 = vsel %vm420, %v419, %v414
      %v422 = vlaneseq
      %v423 = vshrl.u32 %v422, 7
      %v424 = vsub.s32 %v196, %v423
      %v425 = vrot.slane %v403, %v424
      %v426 = vlaneseq
      %v427 = vshrl.u32 %v426, 7
      %v428 = vsub.s32 %v415, %v427
      %v429 = vrot.slane %v406, %v428
      %v430 = vsel %vm420, %v429, %v425
      %vm431 = vcmask 1041409
      %v432 = vsel %vm431, %v430, %v421
      %vm434 = vcmask 123904
      %v435 = vsel %vm434, %v432, 0.0
      %436 = vadd.xlane.f32.xlu0 %v435
      %v437 = vpop.xlane.xlu0 %436
      %v438 = vrsqrt.pop %v437
      %v439 = vmul.f32 %v437, %v438
      %vm440 = vcmp.eq.f32.partialorder %v437, inf
      %v441 = vsel %vm440, %v437, %v439
      %vm442 = vcmp.eq.f32.partialorder %v437, 0.0
      %v443 = vand.u32 %v437, 2147483648
      %v444 = vsel %vm442, %v443, %v441
      %vm445 = vcmp.eq.s32.totalorder %v196, 2
      %vm446 = vcmask 1024
      %v447 = vsel %vm446, %v444, 0.0
      %448 = vadd.xlane.f32.xlu0 %v447
      %v449 = vpop.xlane.xlu0 %448
      %v450 = vrot.slane %v449, 4
      %v451 = vadd.f32 %v449, %v450
      %v452 = vrot.slane %v451, 2
      %v453 = vadd.f32 %v451, %v452
      %v454 = vrot.slane %v453, 1
      %v455 = vadd.f32 %v453, %v454
      %s456 = vtos %v455
      %v457 = vstv %s456
      %v458 = vsel %vm445, %v457, 0.0
      %v459 = vadd.f32 %v203, %v458
      %460 = vst [vmem:[#allocation8] sm:$0xff] %v459
    $region45: #{tpu_custom_call.1} parent=1 // pred_fallthru
      _
    // Predicated region
    $region46: #{tpu_custom_call.1} parent=1 // pred_check
      _
    $region47: #{tpu_custom_call.1} parent=1 // pred_check_branch
      %462 = sbr.rel (0) target = $region49
    $region48: #{tpu_custom_call.1} parent=1 // pred_region
      %s464 = ssub.s32 128, 128
      %465 = vsyncadd [#allocation4], %s464
      %s467 = sshll.u32 [#allocation8], 4
      %s468 = int_to_ptr.vmem [resolvable:$true] %s467
      %470 = dma.vmem_to_hbm [thread:$0]  %s468, 128, %s6, [#allocation4]
    $region49: #{tpu_custom_call.1} parent=1 // pred_fallthru
      _
    // Predicated region
    $region50: #{tpu_custom_call.1} parent=1 // pred_check
      _
    $region51: #{tpu_custom_call.1} parent=1 // pred_check_branch
      %472 = sbr.rel (0) target = $region53
    $region52: #{tpu_custom_call.1} parent=1 // pred_region
      %473 = dma.done [#allocation4], 128
    $region53: #{tpu_custom_call.1} parent=1 // pred_fallthru
      _
    %474 = vsyncpa [#allocation3], 1
    %475 = vsyncpa [#allocation6], 1
    %476 = vsyncpa [#allocation4], 1

</llo_original>
